<compile_context>
chip_gen: v7x
topology: tpu7x:2x2x1
jax: 0.10.0
libtpu: 0.0.40
codegen_flags: <defaults>
</compile_context>

<pallas_src>
import numpy as np
import jax
import jax.numpy as jnp
from jax import lax
from jax.experimental import pallas as pl
from jax.experimental.pallas import tpu as pltpu

BN_EPS = 1e-5
SIM_THRESHOLD = 0.5

# Conservative single-block VMEM budget valid on every generation
# (v7x physical VMEM per TC is 64 MiB; leave headroom for compiler scratch).
VMEM_CAP_BYTES = 48 << 20


# ----------------------------------------------------------------------------
# Pallas kernel: fused feature selection + rating-prediction MLP
# ----------------------------------------------------------------------------
def cdr_sb_kernel(
    zu_ref, cu_ref, zv_ref, cv_ref,   # rep_u / rep_v outputs      (B, D)  bf16
    m_ref,                            # packed selection masks     (B, 3)  bf16
    w1_ref, aux1_ref,                 # w_uv_1 (2D, D) bf16 + [b1; g1; be1] f32
    w2_ref, aux2_ref,                 # w_uv_2 (D, D/2) bf16 + [b2; g2; be2]
    w3_ref, aux3_ref,                 # w_uv_3 (D/2, D/4) bf16 + [b3; g3; be3]
    wf_ref,                           # final weight row (1, D//4) f32
    bf_ref,                           # final bias scalar, SMEM (1, 1) f32
    out_ref,                          # lane-dense scores (1, B)   f32
):
    zu, cu = zu_ref[...], cu_ref[...]
    zv, cv = zv_ref[...], cv_ref[...]
    m = m_ref[...]                    # bf16 0/1 masks (exact in bf16)

    # per-sample feature selection (reproduces the python loop branches,
    # including the original's use of embed_u_c for the v-feature in the
    # empty-history branch).  bf16 VPU adds; masks are exact 0/1.
    u_feat = zu + m[:, 0:1] * cu
    v_feat = zv + m[:, 1:2] * cv + m[:, 2:3] * cu

    # single fused K=2D dot (lane concat is cheap; K,N <= 64 so this halves
    # the layer-1 MXU push count vs. two split dots).
    uv = jnp.concatenate([u_feat, v_feat], axis=-1)          # (B, 2D) bf16

    inv_n = 1.0 / zu.shape[0]  # training-mode BN: biased full-batch statistics

    def bias_relu_bn(h, aux_ref):
        # NOTE: single-pass var = E[x^2] - E[x]^2 in f32; post-ReLU
        # activations keep this well conditioned (documented deviation from
        # PyTorch's two-pass variance).
        aux = aux_ref[...]                       # (3, F) f32: [bias; gamma; beta]
        b, g, be = aux[0:1, :], aux[1:2, :], aux[2:3, :]
        h = jnp.maximum(h + b, 0.0)              # Linear bias + ReLU (f32 VPU)
        s1 = jnp.sum(h, axis=0, keepdims=True)
        s2 = jnp.sum(h * h, axis=0, keepdims=True)
        mean = s1 * inv_n
        var = s2 * inv_n - mean * mean
        scale = g * lax.rsqrt(var + BN_EPS)      # EUP rsqrt
        shift = be - mean * scale
        return h * scale + shift

    # layer 1: cat([u, v]) @ W1   (bf16 MXU, f32 accumulate)
    h = jnp.dot(uv, w1_ref[...], preferred_element_type=jnp.float32)
    h = bias_relu_bn(h, aux1_ref)

    # layer 2
    h = jnp.dot(h.astype(jnp.bfloat16), w2_ref[...],
                preferred_element_type=jnp.float32)
    h = bias_relu_bn(h, aux2_ref)

    # layer 3
    h = jnp.dot(h.astype(jnp.bfloat16), w3_ref[...],
                preferred_element_type=jnp.float32)
    h = bias_relu_bn(h, aux3_ref)

    # final (D//4 -> 1) layer: VPU multiply + lane-axis reduce (XLU) instead of
    # an Nx1 MXU matmul; write scores as a lane-dense (1, B) row.
    # (A (B,1) output would avoid the sublane->lane relayout but pads to
    #  512 B/sample of VMEM, which is the scarce resource here.)
    s = jnp.sum(h * wf_ref[...], axis=-1)        # (B,)
    out_ref[...] = s[None, :] + bf_ref[0, 0]


# ----------------------------------------------------------------------------
# VMEM footprint estimate (padded to (sublane, 128-lane) tiles)
# ----------------------------------------------------------------------------
def _padded_vmem_bytes(shape, dtype):
    itemsize = int(np.dtype(dtype).itemsize)
    shape = tuple(int(s) for s in shape)
    if len(shape) < 2:
        shape = (1,) * (2 - len(shape)) + shape
    *lead, r, c = shape
    sublane = 8 * max(1, 4 // itemsize)          # sub-32-bit packs along sublanes
    pr = ((r + sublane - 1) // sublane) * sublane
    pc = ((c + 127) // 128) * 128
    lead_n = int(np.prod(lead)) if lead else 1
    return lead_n * pr * pc * itemsize


# ----------------------------------------------------------------------------
# Wrapper
# ----------------------------------------------------------------------------
def cdr_sb_forward(zu, cu, zv, cv, masks, params):
    B, D = zu.shape
    D2, D4 = D // 2, D // 4

    # bf16 on the producer side is preferred; cast defensively if needed.
    zu = zu.astype(jnp.bfloat16)
    cu = cu.astype(jnp.bfloat16)
    zv = zv.astype(jnp.bfloat16)
    cv = cv.astype(jnp.bfloat16)
    masks = masks.astype(jnp.bfloat16)

    args = (
        zu, cu, zv, cv, masks,
        params["w1"], params["aux1"],
        params["w2"], params["aux2"],
        params["w3"], params["aux3"],
        params["wf"], params["bf"],
    )

    vmem = pl.BlockSpec(memory_space=pltpu.MemorySpace.VMEM)
    smem = pl.BlockSpec(memory_space=pltpu.MemorySpace.SMEM)
    in_specs = [vmem] * (len(args) - 1) + [smem]   # all VMEM except scalar bf

    # ---- scoped-VMEM budget: actual padded footprint + temporaries + slack
    footprint = sum(_padded_vmem_bytes(a.shape, a.dtype) for a in args[:-1])
    footprint += _padded_vmem_bytes((1, B), jnp.float32)            # output
    footprint += 4 * _padded_vmem_bytes((B, D), jnp.float32)        # f32 h/temps
    footprint += 2 * _padded_vmem_bytes((B, 2 * D), jnp.bfloat16)   # bf16 temps
    assert footprint <= VMEM_CAP_BYTES, (
        f"CDR_SB single-block kernel: batch {B} needs ~{footprint >> 20} MiB of "
        f"VMEM (> {VMEM_CAP_BYTES >> 20} MiB cap valid on v7x). Split the batch "
        "across calls. TODO(synk): two-pass-BN batch-grid variant.")
    vmem_limit = int(min(max(2 * footprint, 8 << 20) + (2 << 20), VMEM_CAP_BYTES))

    flops = 2 * B * (2 * D * D + D * D2 + D2 * D4 + D4)
    bytes_accessed = sum(int(np.prod(a.shape)) * a.dtype.itemsize for a in args)
    bytes_accessed += B * 4                        # output
    cost = pl.CostEstimate(flops=int(flops),
                           transcendentals=int(D + D2 + D4),  # 3x BN rsqrt
                           bytes_accessed=int(bytes_accessed))

    out = pl.pallas_call(
        cdr_sb_kernel,
        out_shape=jax.ShapeDtypeStruct((1, B), jnp.float32),
        in_specs=in_specs,
        out_specs=vmem,
        compiler_params=pltpu.CompilerParams(vmem_limit_bytes=vmem_limit),
        cost_estimate=cost,
    )(*args)
    # matches uv_score.squeeze() for B > 1 (returns shape (B,))
    return out[0]


# ----------------------------------------------------------------------------
# Host-side glue: reproduce the per-sample python branch logic as 0/1 masks
# packed into a single (B, 3) array: [add c_u to z_u, add c_v to z_v,
#                                     add c_u to z_v (empty-history branch)]
# TODO(synk): this data-dependent, variable-length history/cosine-sim logic is
# host-side Python control flow in the original module and stays on the host.
# ----------------------------------------------------------------------------
def compute_selection_masks(nodes_u, nodes_v, red_by_friends, history_uv, item_emb):
    B = len(nodes_u)
    masks = np.zeros((B, 3), np.float32)
    for i in range(B):
        uid = int(nodes_u[i])
        iid = int(nodes_v[i])
        rbf = int(red_by_friends[i])
        purd = [it for it in history_uv[uid] if it != iid]
        if len(purd) > 0:
            if rbf:
                anchor = item_emb[iid]                        # (D,)
                com = item_emb[np.asarray(purd)]              # (P, D)
                num = com @ anchor
                den = np.maximum(np.linalg.norm(com, axis=1), 1e-8) * \
                      np.maximum(np.linalg.norm(anchor), 1e-8)
                sims = num / den
                if sims.max() > SIM_THRESHOLD:
                    masks[i, 0] = 1.0
                    masks[i, 1] = 1.0
        else:
            masks[i, 0] = 1.0
            masks[i, 2] = 1.0
    return jnp.asarray(masks, dtype=jnp.bfloat16)   # 0/1 are exact in bf16


# ----------------------------------------------------------------------------
# Deterministic parameter init (shapes from CDR_SB.__init__), packed layout
# ----------------------------------------------------------------------------
def init_params(key, D):
    D2, D4 = D // 2, D // 4

    def xavier(k, fan_in, fan_out):
        bound = np.sqrt(6.0 / (fan_in + fan_out))
        return jax.random.uniform(k, (fan_in, fan_out), jnp.float32, -bound, bound)

    ks = jax.random.split(key, 8)

    def aux_slab(bias, F):
        return jnp.stack([bias, jnp.ones((F,), jnp.float32),
                          jnp.zeros((F,), jnp.float32)])     # [bias; gamma; beta]

    params = dict(
        w1=xavier(ks[0], 2 * D, D).astype(jnp.bfloat16),     # fused (2D, D)
        aux1=aux_slab(jnp.zeros((D,), jnp.float32), D),
        w2=xavier(ks[1], D, D2).astype(jnp.bfloat16),
        aux2=aux_slab(jax.random.uniform(ks[2], (D2,), jnp.float32, -0.1, 0.1), D2),
        w3=xavier(ks[3], D2, D4).astype(jnp.bfloat16),
        aux3=aux_slab(jax.random.uniform(ks[4], (D4,), jnp.float32, -0.1, 0.1), D4),
        wf=xavier(ks[5], D4, 1).T,                            # (1, D4) row
        bf=jax.random.uniform(ks[6], (1, 1), jnp.float32, -0.1, 0.1),
    )
    return params


if __name__ == "__main__":
    key = jax.random.PRNGKey(0)
    B = 8           # batch (len(nodes_u))
    D = 32          # embed_dim (rep_u.dec_embed_dim)
    NUM_ITEMS = 16

    k_emb, k_z, k_par = jax.random.split(key, 3)
    kz = jax.random.split(k_z, 4)

    # rep_u / rep_v outputs (synthetic stand-ins for the external encoders),
    # produced in bf16 on the "producer" side as per the perf review.
    embed_u_z = jax.random.normal(kz[0], (B, D), jnp.float32).astype(jnp.bfloat16)
    embed_u_c = jax.random.normal(kz[1], (B, D), jnp.float32).astype(jnp.bfloat16)
    embed_v_z = jax.random.normal(kz[2], (B, D), jnp.float32).astype(jnp.bfloat16)
    embed_v_c = jax.random.normal(kz[3], (B, D), jnp.float32).astype(jnp.bfloat16)

    # item embedding table (v2e) used only by calculate_sim on the host
    item_emb = np.asarray(jax.random.normal(k_emb, (NUM_ITEMS, D), jnp.float32))

    # deterministic nodes / interaction history exercising all branches
    nodes_u = np.array([0, 1, 2, 3, 4, 5, 6, 7], np.int32)
    nodes_v = np.array([1, 3, 5, 7, 9, 11, 13, 15], np.int32)
    red_by_friends = np.array([1, 0, 1, 1, 0, 1, 0, 1], np.int32)
    history_uv = {
        0: [1],                # empty after removing item -> empty-history branch
        1: [2, 4],
        2: [5, 6, 7],          # red_by_friend + sim check
        3: [7],                # empty after removing item
        4: [0, 1],
        5: [2, 3, 11],         # red_by_friend + sim check
        6: [8, 9],
        7: [15, 14, 0],        # red_by_friend + sim check
    }

    masks = compute_selection_masks(nodes_u, nodes_v, red_by_friends,
                                    history_uv, item_emb)
    params = init_params(k_par, D)

    scores = cdr_sb_forward(embed_u_z, embed_u_c, embed_v_z, embed_v_c,
                            masks, params)
    scores = jax.block_until_ready(scores)
    assert scores.shape == (B,)
    assert np.all(np.isfinite(np.asarray(scores)))
    print("KERNEL_OK")
</pallas_src>

<mosaic_0001>
module attributes {stable_mosaic.version = 11 : i64} {
  func.func @cdr_sb_kernel(%arg0: memref<8x32xbf16, #tpu.memory_space<vmem>>, %arg1: memref<8x32xbf16, #tpu.memory_space<vmem>>, %arg2: memref<8x32xbf16, #tpu.memory_space<vmem>>, %arg3: memref<8x32xbf16, #tpu.memory_space<vmem>>, %arg4: memref<8x3xbf16, #tpu.memory_space<vmem>>, %arg5: memref<64x32xbf16, #tpu.memory_space<vmem>>, %arg6: memref<3x32xf32, #tpu.memory_space<vmem>>, %arg7: memref<32x16xbf16, #tpu.memory_space<vmem>>, %arg8: memref<3x16xf32, #tpu.memory_space<vmem>>, %arg9: memref<16x8xbf16, #tpu.memory_space<vmem>>, %arg10: memref<3x8xf32, #tpu.memory_space<vmem>>, %arg11: memref<1x8xf32, #tpu.memory_space<vmem>>, %arg12: memref<1x1xf32, #tpu.memory_space<smem>>, %arg13: memref<1x8xf32, #tpu.memory_space<vmem>>) attributes {dimension_semantics = [], scalar_prefetch = 0 : i64, scratch_operands = 0 : i64, tpu.core_type = #tpu.core_type<tc>} {
    %c0 = arith.constant 0 : index
    %c0_0 = arith.constant 0 : index
    %0 = vector.load %arg0[%c0, %c0_0] : memref<8x32xbf16, #tpu.memory_space<vmem>>, vector<8x32xbf16>
    %c0_1 = arith.constant 0 : index
    %c0_2 = arith.constant 0 : index
    %1 = vector.load %arg1[%c0_1, %c0_2] : memref<8x32xbf16, #tpu.memory_space<vmem>>, vector<8x32xbf16>
    %c0_3 = arith.constant 0 : index
    %c0_4 = arith.constant 0 : index
    %2 = vector.load %arg2[%c0_3, %c0_4] : memref<8x32xbf16, #tpu.memory_space<vmem>>, vector<8x32xbf16>
    %c0_5 = arith.constant 0 : index
    %c0_6 = arith.constant 0 : index
    %3 = vector.load %arg3[%c0_5, %c0_6] : memref<8x32xbf16, #tpu.memory_space<vmem>>, vector<8x32xbf16>
    %c0_7 = arith.constant 0 : index
    %c0_8 = arith.constant 0 : index
    %4 = vector.load %arg4[%c0_7, %c0_8] : memref<8x3xbf16, #tpu.memory_space<vmem>>, vector<8x3xbf16>
    %5 = vector.extract_strided_slice %4 {offsets = [0, 0], sizes = [8, 1], strides = [1, 1]} : vector<8x3xbf16> to vector<8x1xbf16>
    %6 = vector.broadcast %5 : vector<8x1xbf16> to vector<8x32xbf16>
    %7 = arith.mulf %6, %1 : vector<8x32xbf16>
    %8 = arith.addf %0, %7 : vector<8x32xbf16>
    %9 = vector.extract_strided_slice %4 {offsets = [0, 1], sizes = [8, 1], strides = [1, 1]} : vector<8x3xbf16> to vector<8x1xbf16>
    %10 = vector.broadcast %9 : vector<8x1xbf16> to vector<8x32xbf16>
    %11 = arith.mulf %10, %3 : vector<8x32xbf16>
    %12 = arith.addf %2, %11 : vector<8x32xbf16>
    %13 = vector.extract_strided_slice %4 {offsets = [0, 2], sizes = [8, 1], strides = [1, 1]} : vector<8x3xbf16> to vector<8x1xbf16>
    %14 = vector.broadcast %13 : vector<8x1xbf16> to vector<8x32xbf16>
    %15 = arith.mulf %14, %1 : vector<8x32xbf16>
    %16 = arith.addf %12, %15 : vector<8x32xbf16>
    %17 = tpu.concatenate %8, %16 in 1 : vector<8x32xbf16>, vector<8x32xbf16> -> vector<8x64xbf16>
    %c0_9 = arith.constant 0 : index
    %c0_10 = arith.constant 0 : index
    %18 = vector.load %arg5[%c0_9, %c0_10] : memref<64x32xbf16, #tpu.memory_space<vmem>>, vector<64x32xbf16>
    %cst = arith.constant dense<0.000000e+00> : vector<8x32xf32>
    %19 = tpu.matmul %17, %18, %cst {dimension_numbers = #tpu.dot_dimension_numbers<[1], [0], [0], [1], [0, 0, 1, 1], [], []>} : vector<8x64xbf16>, vector<64x32xbf16>, vector<8x32xf32> -> vector<8x32xf32>
    %c0_11 = arith.constant 0 : index
    %c0_12 = arith.constant 0 : index
    %20 = vector.load %arg6[%c0_11, %c0_12] : memref<3x32xf32, #tpu.memory_space<vmem>>, vector<3x32xf32>
    %21 = vector.extract_strided_slice %20 {offsets = [0, 0], sizes = [1, 32], strides = [1, 1]} : vector<3x32xf32> to vector<1x32xf32>
    %22 = vector.extract_strided_slice %20 {offsets = [1, 0], sizes = [1, 32], strides = [1, 1]} : vector<3x32xf32> to vector<1x32xf32>
    %23 = vector.extract_strided_slice %20 {offsets = [2, 0], sizes = [1, 32], strides = [1, 1]} : vector<3x32xf32> to vector<1x32xf32>
    %24 = vector.broadcast %21 : vector<1x32xf32> to vector<8x32xf32>
    %25 = arith.addf %19, %24 : vector<8x32xf32>
    %cst_13 = arith.constant 0.000000e+00 : f32
    %26 = vector.broadcast %cst_13 : f32 to vector<8x32xf32>
    %27 = arith.maximumf %25, %26 : vector<8x32xf32>
    %cst_14 = arith.constant dense<0.000000e+00> : vector<32xf32>
    %28 = vector.multi_reduction <add>, %27, %cst_14 [0] : vector<8x32xf32> to vector<32xf32>
    %29 = vector.shape_cast %28 : vector<32xf32> to vector<1x32xf32>
    %30 = arith.mulf %27, %27 : vector<8x32xf32>
    %cst_15 = arith.constant dense<0.000000e+00> : vector<32xf32>
    %31 = vector.multi_reduction <add>, %30, %cst_15 [0] : vector<8x32xf32> to vector<32xf32>
    %32 = vector.shape_cast %31 : vector<32xf32> to vector<1x32xf32>
    %cst_16 = arith.constant 1.250000e-01 : f32
    %33 = vector.broadcast %cst_16 : f32 to vector<1x32xf32>
    %34 = arith.mulf %29, %33 : vector<1x32xf32>
    %cst_17 = arith.constant 1.250000e-01 : f32
    %35 = vector.broadcast %cst_17 : f32 to vector<1x32xf32>
    %36 = arith.mulf %32, %35 : vector<1x32xf32>
    %37 = arith.mulf %34, %34 : vector<1x32xf32>
    %38 = arith.subf %36, %37 : vector<1x32xf32>
    %cst_18 = arith.constant 9.99999974E-6 : f32
    %39 = vector.broadcast %cst_18 : f32 to vector<1x32xf32>
    %40 = arith.addf %38, %39 : vector<1x32xf32>
    %41 = math.rsqrt %40 : vector<1x32xf32>
    %42 = arith.mulf %22, %41 : vector<1x32xf32>
    %43 = arith.mulf %34, %42 : vector<1x32xf32>
    %44 = arith.subf %23, %43 : vector<1x32xf32>
    %45 = vector.broadcast %42 : vector<1x32xf32> to vector<8x32xf32>
    %46 = arith.mulf %27, %45 : vector<8x32xf32>
    %47 = vector.broadcast %44 : vector<1x32xf32> to vector<8x32xf32>
    %48 = arith.addf %46, %47 : vector<8x32xf32>
    %49 = arith.truncf %48 : vector<8x32xf32> to vector<8x32xbf16>
    %c0_19 = arith.constant 0 : index
    %c0_20 = arith.constant 0 : index
    %50 = vector.load %arg7[%c0_19, %c0_20] : memref<32x16xbf16, #tpu.memory_space<vmem>>, vector<32x16xbf16>
    %cst_21 = arith.constant dense<0.000000e+00> : vector<8x16xf32>
    %51 = tpu.matmul %49, %50, %cst_21 {dimension_numbers = #tpu.dot_dimension_numbers<[1], [0], [0], [1], [0, 0, 1, 1], [], []>} : vector<8x32xbf16>, vector<32x16xbf16>, vector<8x16xf32> -> vector<8x16xf32>
    %c0_22 = arith.constant 0 : index
    %c0_23 = arith.constant 0 : index
    %52 = vector.load %arg8[%c0_22, %c0_23] : memref<3x16xf32, #tpu.memory_space<vmem>>, vector<3x16xf32>
    %53 = vector.extract_strided_slice %52 {offsets = [0, 0], sizes = [1, 16], strides = [1, 1]} : vector<3x16xf32> to vector<1x16xf32>
    %54 = vector.extract_strided_slice %52 {offsets = [1, 0], sizes = [1, 16], strides = [1, 1]} : vector<3x16xf32> to vector<1x16xf32>
    %55 = vector.extract_strided_slice %52 {offsets = [2, 0], sizes = [1, 16], strides = [1, 1]} : vector<3x16xf32> to vector<1x16xf32>
    %56 = vector.broadcast %53 : vector<1x16xf32> to vector<8x16xf32>
    %57 = arith.addf %51, %56 : vector<8x16xf32>
    %cst_24 = arith.constant 0.000000e+00 : f32
    %58 = vector.broadcast %cst_24 : f32 to vector<8x16xf32>
    %59 = arith.maximumf %57, %58 : vector<8x16xf32>
    %cst_25 = arith.constant dense<0.000000e+00> : vector<16xf32>
    %60 = vector.multi_reduction <add>, %59, %cst_25 [0] : vector<8x16xf32> to vector<16xf32>
    %61 = vector.shape_cast %60 : vector<16xf32> to vector<1x16xf32>
    %62 = arith.mulf %59, %59 : vector<8x16xf32>
    %cst_26 = arith.constant dense<0.000000e+00> : vector<16xf32>
    %63 = vector.multi_reduction <add>, %62, %cst_26 [0] : vector<8x16xf32> to vector<16xf32>
    %64 = vector.shape_cast %63 : vector<16xf32> to vector<1x16xf32>
    %cst_27 = arith.constant 1.250000e-01 : f32
    %65 = vector.broadcast %cst_27 : f32 to vector<1x16xf32>
    %66 = arith.mulf %61, %65 : vector<1x16xf32>
    %cst_28 = arith.constant 1.250000e-01 : f32
    %67 = vector.broadcast %cst_28 : f32 to vector<1x16xf32>
    %68 = arith.mulf %64, %67 : vector<1x16xf32>
    %69 = arith.mulf %66, %66 : vector<1x16xf32>
    %70 = arith.subf %68, %69 : vector<1x16xf32>
    %cst_29 = arith.constant 9.99999974E-6 : f32
    %71 = vector.broadcast %cst_29 : f32 to vector<1x16xf32>
    %72 = arith.addf %70, %71 : vector<1x16xf32>
    %73 = math.rsqrt %72 : vector<1x16xf32>
    %74 = arith.mulf %54, %73 : vector<1x16xf32>
    %75 = arith.mulf %66, %74 : vector<1x16xf32>
    %76 = arith.subf %55, %75 : vector<1x16xf32>
    %77 = vector.broadcast %74 : vector<1x16xf32> to vector<8x16xf32>
    %78 = arith.mulf %59, %77 : vector<8x16xf32>
    %79 = vector.broadcast %76 : vector<1x16xf32> to vector<8x16xf32>
    %80 = arith.addf %78, %79 : vector<8x16xf32>
    %81 = arith.truncf %80 : vector<8x16xf32> to vector<8x16xbf16>
    %c0_30 = arith.constant 0 : index
    %c0_31 = arith.constant 0 : index
    %82 = vector.load %arg9[%c0_30, %c0_31] : memref<16x8xbf16, #tpu.memory_space<vmem>>, vector<16x8xbf16>
    %cst_32 = arith.constant dense<0.000000e+00> : vector<8x8xf32>
    %83 = tpu.matmul %81, %82, %cst_32 {dimension_numbers = #tpu.dot_dimension_numbers<[1], [0], [0], [1], [0, 0, 1, 1], [], []>} : vector<8x16xbf16>, vector<16x8xbf16>, vector<8x8xf32> -> vector<8x8xf32>
    %c0_33 = arith.constant 0 : index
    %c0_34 = arith.constant 0 : index
    %84 = vector.load %arg10[%c0_33, %c0_34] : memref<3x8xf32, #tpu.memory_space<vmem>>, vector<3x8xf32>
    %85 = vector.extract_strided_slice %84 {offsets = [0, 0], sizes = [1, 8], strides = [1, 1]} : vector<3x8xf32> to vector<1x8xf32>
    %86 = vector.extract_strided_slice %84 {offsets = [1, 0], sizes = [1, 8], strides = [1, 1]} : vector<3x8xf32> to vector<1x8xf32>
    %87 = vector.extract_strided_slice %84 {offsets = [2, 0], sizes = [1, 8], strides = [1, 1]} : vector<3x8xf32> to vector<1x8xf32>
    %88 = vector.broadcast %85 : vector<1x8xf32> to vector<8x8xf32>
    %89 = arith.addf %83, %88 : vector<8x8xf32>
    %cst_35 = arith.constant 0.000000e+00 : f32
    %90 = vector.broadcast %cst_35 : f32 to vector<8x8xf32>
    %91 = arith.maximumf %89, %90 : vector<8x8xf32>
    %cst_36 = arith.constant dense<0.000000e+00> : vector<8xf32>
    %92 = vector.multi_reduction <add>, %91, %cst_36 [0] : vector<8x8xf32> to vector<8xf32>
    %93 = vector.shape_cast %92 : vector<8xf32> to vector<1x8xf32>
    %94 = arith.mulf %91, %91 : vector<8x8xf32>
    %cst_37 = arith.constant dense<0.000000e+00> : vector<8xf32>
    %95 = vector.multi_reduction <add>, %94, %cst_37 [0] : vector<8x8xf32> to vector<8xf32>
    %96 = vector.shape_cast %95 : vector<8xf32> to vector<1x8xf32>
    %cst_38 = arith.constant 1.250000e-01 : f32
    %97 = vector.broadcast %cst_38 : f32 to vector<1x8xf32>
    %98 = arith.mulf %93, %97 : vector<1x8xf32>
    %cst_39 = arith.constant 1.250000e-01 : f32
    %99 = vector.broadcast %cst_39 : f32 to vector<1x8xf32>
    %100 = arith.mulf %96, %99 : vector<1x8xf32>
    %101 = arith.mulf %98, %98 : vector<1x8xf32>
    %102 = arith.subf %100, %101 : vector<1x8xf32>
    %cst_40 = arith.constant 9.99999974E-6 : f32
    %103 = vector.broadcast %cst_40 : f32 to vector<1x8xf32>
    %104 = arith.addf %102, %103 : vector<1x8xf32>
    %105 = math.rsqrt %104 : vector<1x8xf32>
    %106 = arith.mulf %86, %105 : vector<1x8xf32>
    %107 = arith.mulf %98, %106 : vector<1x8xf32>
    %108 = arith.subf %87, %107 : vector<1x8xf32>
    %109 = vector.broadcast %106 : vector<1x8xf32> to vector<8x8xf32>
    %110 = arith.mulf %91, %109 : vector<8x8xf32>
    %111 = vector.broadcast %108 : vector<1x8xf32> to vector<8x8xf32>
    %112 = arith.addf %110, %111 : vector<8x8xf32>
    %c0_41 = arith.constant 0 : index
    %c0_42 = arith.constant 0 : index
    %113 = vector.load %arg11[%c0_41, %c0_42] : memref<1x8xf32, #tpu.memory_space<vmem>>, vector<1x8xf32>
    %114 = vector.broadcast %113 : vector<1x8xf32> to vector<8x8xf32>
    %115 = arith.mulf %112, %114 : vector<8x8xf32>
    %cst_43 = arith.constant dense<0.000000e+00> : vector<8xf32>
    %116 = vector.multi_reduction <add>, %115, %cst_43 [1] : vector<8x8xf32> to vector<8xf32>
    %117 = vector.shape_cast %116 : vector<8xf32> to vector<1x8xf32>
    %c0_44 = arith.constant 0 : index
    %c0_45 = arith.constant 0 : index
    %118 = memref.load %arg12[%c0_44, %c0_45] : memref<1x1xf32, #tpu.memory_space<smem>>
    %119 = vector.broadcast %118 : f32 to vector<1x8xf32>
    %120 = arith.addf %117, %119 : vector<1x8xf32>
    %c0_46 = arith.constant 0 : index
    %c0_47 = arith.constant 0 : index
    %121 = vector.load %arg13[%c0_46, %c0_47] : memref<1x8xf32, #tpu.memory_space<vmem>>, vector<1x8xf32>
    tpu.vector_store %arg13[%c0_46, %c0_47], %120 {strides = array<i32>} : memref<1x8xf32, #tpu.memory_space<vmem>>, vector<1x8xf32>,
    return
  }
}

</mosaic_0001>

<llo_original>
// kernel: tpu_custom_call.1
$region0: #{tpu_custom_call.1}
  #allocation0 [shape = 'u32[]', space=smem, size = 0x4, offset = 0x4, fixed_abs, tag = 'smem constant byte address 0x4 - core index']
  #allocation1 [shape = 'u32[144,128]{1,0:T(1,128)}', space=vmem, size = 0x12000, scoped, tag = 'internal scratch']
  #allocation2 [shape = 'f32[1,1]{1,0:T(1,128)S(6)}', space=smem, size = 0x200, scoped, tag = 'scoped memory for tpu_custom_call.1']
  %s0 = inlined_call_operand.vmem [shape: bf16[8,32], index: 0, kind: input, shape index: {}]
  %s1 = inlined_call_operand.vmem [shape: bf16[8,32], index: 1, kind: input, shape index: {}]
  %s2 = inlined_call_operand.vmem [shape: bf16[8,32], index: 2, kind: input, shape index: {}]
  %s3 = inlined_call_operand.vmem [shape: bf16[8,32], index: 3, kind: input, shape index: {}]
  %s4 = inlined_call_operand.vmem [shape: bf16[8,3], index: 4, kind: input, shape index: {}]
  %s5 = inlined_call_operand.vmem [shape: bf16[64,32], index: 5, kind: input, shape index: {}]
  %s6 = inlined_call_operand.vmem [shape: f32[3,32], index: 6, kind: input, shape index: {}]
  %s7 = inlined_call_operand.vmem [shape: bf16[32,16], index: 7, kind: input, shape index: {}]
  %s8 = inlined_call_operand.vmem [shape: f32[3,16], index: 8, kind: input, shape index: {}]
  %s9 = inlined_call_operand.vmem [shape: bf16[16,8], index: 9, kind: input, shape index: {}]
  %s10 = inlined_call_operand.vmem [shape: f32[3,8], index: 10, kind: input, shape index: {}]
  %s11 = inlined_call_operand.vmem [shape: f32[1,8], index: 11, kind: input, shape index: {}]
  %s12 = inlined_call_operand.<no memory space> [shape: f32[1,1], index: 12, kind: input, shape index: {}]
  %s13 = inlined_call_operand.hbm [shape: f32[1,8], index: 13, kind: output, shape index: {}]
  %s14 = sld [smem:[#allocation0]]
  $region62: #{tpu_custom_call.1} parent=0
    _
  %s16 = ssub.s32 1, %s14
  %s17 = scalar_select 0, %s16, %s14
  %18 = sst [smem:[#allocation2]] %s12
  $region1: #{tpu_custom_call.1} parent=0
    #allocation3 [shape = 'u8[512]{0}', space=vmem, size = 0x400, scoped, tag = 'output window, operand 0, single buffered']
    #allocation4 [shape = 's32[1]{0}', space=sflag, size = 0x4, scoped, tag = 'scoped memory for tpu_custom_call.1']
    %19 = vsyncpa [#allocation4], 0
    // Predicated region
    $region2: #{tpu_custom_call.1} parent=1 // pred_check
      _
    $region3: #{tpu_custom_call.1} parent=1 // pred_check_branch
      %21 = sbr.rel (0) target = $region5
    $region4: #{tpu_custom_call.1} parent=1 // pred_region
      _
    $region5: #{tpu_custom_call.1} parent=1 // pred_fallthru
      _
    // Predicated region
    $region6: #{tpu_custom_call.1} parent=1 // pred_check
      _
    $region7: #{tpu_custom_call.1} parent=1 // pred_check_branch
      %23 = sbr.rel (0) target = $region9
    $region8: #{tpu_custom_call.1} parent=1 // pred_region
      _
    $region9: #{tpu_custom_call.1} parent=1 // pred_fallthru
      _
    // Predicated region
    $region10: #{tpu_custom_call.1} parent=1 // pred_check
      _
    $region11: #{tpu_custom_call.1} parent=1 // pred_check_branch
      %25 = sbr.rel (0) target = $region13
    $region12: #{tpu_custom_call.1} parent=1 // pred_region
      _
    $region13: #{tpu_custom_call.1} parent=1 // pred_fallthru
      _
    // Predicated region
    $region14: #{tpu_custom_call.1} parent=1 // pred_check
      _
    $region15: #{tpu_custom_call.1} parent=1 // pred_check_branch
      %27 = sbr.rel (0) target = $region17
    $region16: #{tpu_custom_call.1} parent=1 // pred_region
      _
    $region17: #{tpu_custom_call.1} parent=1 // pred_fallthru
      _
    // Predicated region
    $region18: #{tpu_custom_call.1} parent=1 // pred_check
      _
    $region19: #{tpu_custom_call.1} parent=1 // pred_check_branch
      %29 = sbr.rel (0) target = $region21
    $region20: #{tpu_custom_call.1} parent=1 // pred_region
      _
    $region21: #{tpu_custom_call.1} parent=1 // pred_fallthru
      _
    // Predicated region
    $region22: #{tpu_custom_call.1} parent=1 // pred_check
      _
    $region23: #{tpu_custom_call.1} parent=1 // pred_check_branch
      %31 = sbr.rel (0) target = $region25
    $region24: #{tpu_custom_call.1} parent=1 // pred_region
      _
    $region25: #{tpu_custom_call.1} parent=1 // pred_fallthru
      _
    // Predicated region
    $region26: #{tpu_custom_call.1} parent=1 // pred_check
      _
    $region27: #{tpu_custom_call.1} parent=1 // pred_check_branch
      %33 = sbr.rel (0) target = $region29
    $region28: #{tpu_custom_call.1} parent=1 // pred_region
      _
    $region29: #{tpu_custom_call.1} parent=1 // pred_fallthru
      _
    // Predicated region
    $region30: #{tpu_custom_call.1} parent=1 // pred_check
      _
    $region31: #{tpu_custom_call.1} parent=1 // pred_check_branch
      %35 = sbr.rel (0) target = $region33
    $region32: #{tpu_custom_call.1} parent=1 // pred_region
      _
    $region33: #{tpu_custom_call.1} parent=1 // pred_fallthru
      _
    // Predicated region
    $region34: #{tpu_custom_call.1} parent=1 // pred_check
      _
    $region35: #{tpu_custom_call.1} parent=1 // pred_check_branch
      %37 = sbr.rel (0) target = $region37
    $region36: #{tpu_custom_call.1} parent=1 // pred_region
      _
    $region37: #{tpu_custom_call.1} parent=1 // pred_fallthru
      _
    // Predicated region
    $region38: #{tpu_custom_call.1} parent=1 // pred_check
      _
    $region39: #{tpu_custom_call.1} parent=1 // pred_check_branch
      %39 = sbr.rel (0) target = $region41
    $region40: #{tpu_custom_call.1} parent=1 // pred_region
      _
    $region41: #{tpu_custom_call.1} parent=1 // pred_fallthru
      _
    // Predicated region
    $region42: #{tpu_custom_call.1} parent=1 // pred_check
      _
    $region43: #{tpu_custom_call.1} parent=1 // pred_check_branch
      %41 = sbr.rel (0) target = $region45
    $region44: #{tpu_custom_call.1} parent=1 // pred_region
      _
    $region45: #{tpu_custom_call.1} parent=1 // pred_fallthru
      _
    // Predicated region
    $region46: #{tpu_custom_call.1} parent=1 // pred_check
      _
    $region47: #{tpu_custom_call.1} parent=1 // pred_check_branch
      %43 = sbr.rel (0) target = $region49
    $region48: #{tpu_custom_call.1} parent=1 // pred_region
      _
    $region49: #{tpu_custom_call.1} parent=1 // pred_fallthru
      _
    // Predicated region
    $region50: #{tpu_custom_call.1} parent=1 // pred_check
      _
    $region51: #{tpu_custom_call.1} parent=1 // pred_check_branch
      %45 = sbr.rel (0) target = $region53
    $region52: #{tpu_custom_call.1} parent=1 // pred_region
      _
    $region53: #{tpu_custom_call.1} parent=1 // pred_fallthru
      _
    %v47 = vld [vmem:[%s0] sm:$0xf]
    %v48 = vld [vmem:[%s1] sm:$0xf]
    %v49 = vld [vmem:[%s2] sm:$0xf]
    %v50 = vld [vmem:[%s3] sm:$0xf]
    %v51 = vld [vmem:[%s4] sm:$0xf]
    %53 = vset.pattern.permute.xlu0 0
    %54 = vperm.xlu0 %53, %v51
    %v55 = vpop.permute.xlu0 %54
    %v58 = vunpack.c.l.s4 839922192
    %v59 = vunpack.c.0.s8 %v58
    %v60 = vlaneseq
    %v61 = vshrl.u32 %v60, 7
    %v62 = vsub.s32 %v59, %v61
    %v63 = vrot.slane %v55, %v62
    %v64 = vmul.bf16 %v63, %v48
    %v65 = vadd.bf16 %v47, %v64
    %66 = vset.pattern.permute.xlu0 1
    %67 = vperm.xlu0 %66, %v51
    %v68 = vpop.permute.xlu0 %67
    %v71 = vunpack.c.l.s4 839922192
    %v72 = vunpack.c.0.s8 %v71
    %v73 = vlaneseq
    %v74 = vshrl.u32 %v73, 7
    %v75 = vsub.s32 %v72, %v74
    %v76 = vrot.slane %v68, %v75
    %v77 = vmul.bf16 %v76, %v50
    %v78 = vadd.bf16 %v49, %v77
    %79 = vset.pattern.permute.xlu0 2
    %80 = vperm.xlu0 %79, %v51
    %v81 = vpop.permute.xlu0 %80
    %v84 = vunpack.c.l.s4 839922192
    %v85 = vunpack.c.0.s8 %v84
    %v86 = vlaneseq
    %v87 = vshrl.u32 %v86, 7
    %v88 = vsub.s32 %v85, %v87
    %v89 = vrot.slane %v81, %v88
    %v90 = vmul.bf16 %v89, %v48
    %v91 = vadd.bf16 %v78, %v90
    %v93 = vunpack.c.l.b16 %v91
    %v94 = vpack.c.b16 %v93, %v93
    %95 = vrot.lane.b32.xlu0 %v94, 32
    %v96 = vpop.permute.xlu0 %95
    %vm97 = vcmask 261120
    %v100 = vsel %vm97, %v65, %v96
    %v101 = vld [vmem:[%s5] sm:$0xf]
    %v102 = vld [vmem:[%s5 + $0x4] sm:$0xf]
    %v103 = vld [vmem:[%s5 + $0x8] sm:$0xf]
    %v104 = vld [vmem:[%s5 + $0xc] sm:$0xf]
    %v105 = vld [vmem:[%s5 + $0x10] sm:$0xf]
    %v106 = vld [vmem:[%s5 + $0x14] sm:$0xf]
    %v107 = vld [vmem:[%s5 + $0x18] sm:$0xf]
    %v108 = vld [vmem:[%s5 + $0x1c] sm:$0xf]
    %v109 = vld [vmem:[%s6] sm:$0x7]
    %v110 = vlaneseq
    %v111 = vshrl.u32 %v110, 7
    %v112 = vsub.s32 0, %v111
    %v113 = vrot.slane %v109, %v112
    %v122 = vunpack.c.l.b16 %v101
    %v123 = vunpack.c.l.b16 %v102
    %v124 = vunpack.c.l.b16 %v103
    %v125 = vunpack.c.l.b16 %v104
    %v126 = vunpack.c.l.b16 %v105
    %v127 = vunpack.c.l.b16 %v106
    %v128 = vunpack.c.l.b16 %v107
    %v129 = vunpack.c.l.b16 %v108
    %v130 = vpack.c.b16 %v123, %v122
    %v131 = vpack.c.b16 %v125, %v124
    %v132 = vpack.c.b16 %v127, %v126
    %v133 = vpack.c.b16 %v129, %v128
    %vm138 = vcmask 523264
    %v139 = vsel %vm138, %v100, 0
    %141 = vmatprep.subr.bf16.mxu0 0
    %142 = vmatpush1.bf16.msra.mxu0 %v130
    %143 = vmatprep.subr.bf16.mxu0 0
    %144 = vmatpush1.bf16.msra.mxu0 %v131
    %145 = vmatprep.subr.bf16.mxu0 0
    %146 = vmatpush1.bf16.msra.mxu0 %v132
    %147 = vmatprep.subr.bf16.mxu0 0
    %148 = vmatpush1.bf16.msra.mxu0 %v133
    %149 = vmatprep.subr.bf16.mxu0 0
    %150 = vmatpush1.bf16.msra.mxu0 0
    %151 = vmatprep.subr.bf16.mxu0 0
    %152 = vmatpush1.bf16.msra.mxu0 0
    %153 = vmatprep.subr.bf16.mxu0 0
    %154 = vmatpush1.bf16.msra.mxu0 0
    %155 = vmatprep.subr.bf16.mxu0 0
    %156 = vmatpush1.bf16.msra.mxu0 0
    %157 = vmatprep.subr.bf16.mxu0 0
    %158 = vmatpush1.bf16.msra.mxu0 0
    %159 = vmatprep.subr.bf16.mxu0 0
    %160 = vmatpush1.bf16.msra.mxu0 0
    %161 = vmatprep.subr.bf16.mxu0 0
    %162 = vmatpush1.bf16.msra.mxu0 0
    %163 = vmatprep.subr.bf16.mxu0 0
    %164 = vmatpush1.bf16.msra.mxu0 0
    %165 = vmatprep.subr.bf16.mxu0 0
    %166 = vmatpush1.bf16.msra.mxu0 0
    %167 = vmatprep.subr.bf16.mxu0 0
    %168 = vmatpush1.bf16.msra.mxu0 0
    %169 = vmatprep.subr.bf16.mxu0 0
    %170 = vmatpush1.bf16.msra.mxu0 0
    %171 = vmatprep.subr.bf16.mxu0 0
    %172 = vmatpush1.bf16.msra.mxu0 0
    %173 = vmatprep.mubr.bf16.mxu0 0
    %174 = vmatmul.mubr.bf16.gmra.mrb[0].mxu0 %v139
    %v175 = vpop.f32.mrb[0].mxu0
    %v176 = vadd.f32 %v113, %v175
    %v177 = vpop.f32.mrb[0].mxu0
    %v178 = vpop.f32.mrb[0].mxu0
    %v179 = vpop.f32.mrb[0].mxu0
    %180 = vdwg.mxu0
    %v181 = vmax.f32 %v176, 0.0
    %v182 = vsel %vm97, %v181, 0.0
    %v183 = vrot.slane %v182, 4
    %v184 = vadd.f32 %v182, %v183
    %v185 = vrot.slane %v184, 2
    %v186 = vadd.f32 %v184, %v185
    %v187 = vrot.slane %v186, 1
    %v188 = vadd.f32 %v186, %v187
    %v189 = vmul.f32 %v181, %v181
    %v190 = vsel %vm97, %v189, 0.0
    %v191 = vrot.slane %v190, 4
    %v192 = vadd.f32 %v190, %v191
    %v193 = vrot.slane %v192, 2
    %v194 = vadd.f32 %v192, %v193
    %v195 = vrot.slane %v194, 1
    %v196 = vadd.f32 %v194, %v195
    %v197 = vmul.f32 %v188, 0.125
    %v198 = vmul.f32 %v196, 0.125
    %v199 = vmul.f32 %v197, %v197
    %v200 = vsub.f32 %v198, %v199
    %v201 = vadd.f32 %v200, 1e-05
    %v202 = vrsqrt.pop %v201
    %v203 = vmul.f32 %v109, %v202
    %v204 = vmul.f32 %v197, %v203
    %v206 = vrot.slane %v204, 7
    %v208 = vsub.f32 %v109, %v206
    %v209 = vlaneseq
    %v210 = vshrl.u32 %v209, 7
    %v211 = vsub.s32 1, %v210
    %v212 = vrot.slane %v203, %v211
    %v213 = vmul.f32 %v181, %v212
    %v214 = vlaneseq
    %v215 = vshrl.u32 %v214, 7
    %v216 = vsub.s32 2, %v215
    %v217 = vrot.slane %v208, %v216
    %v218 = vadd.f32 %v213, %v217
    %v219 = vpack.c.bf16 %v218, %v218
    %v220 = vld [vmem:[%s7] sm:$0xf]
    %v221 = vld [vmem:[%s7 + $0x4] sm:$0xf]
    %v222 = vld [vmem:[%s7 + $0x8] sm:$0xf]
    %v223 = vld [vmem:[%s7 + $0xc] sm:$0xf]
    %v224 = vld [vmem:[%s8] sm:$0x7]
    %v225 = vlaneseq
    %v226 = vshrl.u32 %v225, 7
    %v227 = vsub.s32 0, %v226
    %v228 = vrot.slane %v224, %v227
    %v233 = vunpack.c.l.b16 %v220
    %v234 = vunpack.c.l.b16 %v221
    %v235 = vunpack.c.l.b16 %v222
    %v236 = vunpack.c.l.b16 %v223
    %v237 = vpack.c.b16 %v234, %v233
    %v238 = vpack.c.b16 %v236, %v235
    %v242 = vsel %vm97, %v219, 0
    %244 = vmatprep.subr.bf16.mxu0 0
    %245 = vmatpush1.bf16.msra.mxu0 %v237
    %246 = vmatprep.subr.bf16.mxu0 0
    %247 = vmatpush1.bf16.msra.mxu0 %v238
    %248 = vmatprep.subr.bf16.mxu0 0
    %249 = vmatpush1.bf16.msra.mxu0 0
    %250 = vmatprep.subr.bf16.mxu0 0
    %251 = vmatpush1.bf16.msra.mxu0 0
    %252 = vmatprep.subr.bf16.mxu0 0
    %253 = vmatpush1.bf16.msra.mxu0 0
    %254 = vmatprep.subr.bf16.mxu0 0
    %255 = vmatpush1.bf16.msra.mxu0 0
    %256 = vmatprep.subr.bf16.mxu0 0
    %257 = vmatpush1.bf16.msra.mxu0 0
    %258 = vmatprep.subr.bf16.mxu0 0
    %259 = vmatpush1.bf16.msra.mxu0 0
    %260 = vmatprep.subr.bf16.mxu0 0
    %261 = vmatpush1.bf16.msra.mxu0 0
    %262 = vmatprep.subr.bf16.mxu0 0
    %263 = vmatpush1.bf16.msra.mxu0 0
    %264 = vmatprep.subr.bf16.mxu0 0
    %265 = vmatpush1.bf16.msra.mxu0 0
    %266 = vmatprep.subr.bf16.mxu0 0
    %267 = vmatpush1.bf16.msra.mxu0 0
    %268 = vmatprep.subr.bf16.mxu0 0
    %269 = vmatpush1.bf16.msra.mxu0 0
    %270 = vmatprep.subr.bf16.mxu0 0
    %271 = vmatpush1.bf16.msra.mxu0 0
    %272 = vmatprep.subr.bf16.mxu0 0
    %273 = vmatpush1.bf16.msra.mxu0 0
    %274 = vmatprep.subr.bf16.mxu0 0
    %275 = vmatpush1.bf16.msra.mxu0 0
    %276 = vmatprep.mubr.bf16.mxu0 0
    %277 = vmatmul.mubr.bf16.gmra.mrb[0].mxu0 %v242
    %v278 = vpop.f32.mrb[0].mxu0
    %v279 = vadd.f32 %v228, %v278
    %v280 = vpop.f32.mrb[0].mxu0
    %v281 = vpop.f32.mrb[0].mxu0
    %v282 = vpop.f32.mrb[0].mxu0
    %283 = vdwg.mxu0
    %v284 = vmax.f32 %v279, 0.0
    %vm285 = vcmask 130048
    %v286 = vsel %vm285, %v284, 0.0
    %v287 = vrot.slane %v286, 4
    %v288 = vadd.f32 %v286, %v287
    %v289 = vrot.slane %v288, 2
    %v290 = vadd.f32 %v288, %v289
    %v291 = vrot.slane %v290, 1
    %v292 = vadd.f32 %v290, %v291
    %v293 = vmul.f32 %v284, %v284
    %v294 = vsel %vm285, %v293, 0.0
    %v295 = vrot.slane %v294, 4
    %v296 = vadd.f32 %v294, %v295
    %v297 = vrot.slane %v296, 2
    %v298 = vadd.f32 %v296, %v297
    %v299 = vrot.slane %v298, 1
    %v300 = vadd.f32 %v298, %v299
    %v301 = vmul.f32 %v292, 0.125
    %v302 = vmul.f32 %v300, 0.125
    %v303 = vmul.f32 %v301, %v301
    %v304 = vsub.f32 %v302, %v303
    %v305 = vadd.f32 %v304, 1e-05
    %v306 = vrsqrt.pop %v305
    %v307 = vmul.f32 %v224, %v306
    %v308 = vmul.f32 %v301, %v307
    %v310 = vrot.slane %v308, 7
    %v312 = vsub.f32 %v224, %v310
    %v313 = vlaneseq
    %v314 = vshrl.u32 %v313, 7
    %v315 = vsub.s32 1, %v314
    %v316 = vrot.slane %v307, %v315
    %v317 = vmul.f32 %v284, %v316
    %v318 = vlaneseq
    %v319 = vshrl.u32 %v318, 7
    %v320 = vsub.s32 2, %v319
    %v321 = vrot.slane %v312, %v320
    %v322 = vadd.f32 %v317, %v321
    %v323 = vpack.c.bf16 %v322, %v322
    %v324 = vld [vmem:[%s9] sm:$0xf]
    %v325 = vld [vmem:[%s9 + $0x4] sm:$0xf]
    %v326 = vld [vmem:[%s10] sm:$0x7]
    %v327 = vlaneseq
    %v328 = vshrl.u32 %v327, 7
    %v329 = vsub.s32 0, %v328
    %v330 = vrot.slane %v326, %v329
    %v333 = vunpack.c.l.b16 %v324
    %v334 = vunpack.c.l.b16 %v325
    %v335 = vpack.c.b16 %v334, %v333
    %v338 = vsel %vm285, %v323, 0
    %340 = vmatprep.subr.bf16.mxu0 0
    %341 = vmatpush1.bf16.msra.mxu0 %v335
    %342 = vmatprep.subr.bf16.mxu0 0
    %343 = vmatpush1.bf16.msra.mxu0 0
    %344 = vmatprep.subr.bf16.mxu0 0
    %345 = vmatpush1.bf16.msra.mxu0 0
    %346 = vmatprep.subr.bf16.mxu0 0
    %347 = vmatpush1.bf16.msra.mxu0 0
    %348 = vmatprep.subr.bf16.mxu0 0
    %349 = vmatpush1.bf16.msra.mxu0 0
    %350 = vmatprep.subr.bf16.mxu0 0
    %351 = vmatpush1.bf16.msra.mxu0 0
    %352 = vmatprep.subr.bf16.mxu0 0
    %353 = vmatpush1.bf16.msra.mxu0 0
    %354 = vmatprep.subr.bf16.mxu0 0
    %355 = vmatpush1.bf16.msra.mxu0 0
    %356 = vmatprep.subr.bf16.mxu0 0
    %357 = vmatpush1.bf16.msra.mxu0 0
    %358 = vmatprep.subr.bf16.mxu0 0
    %359 = vmatpush1.bf16.msra.mxu0 0
    %360 = vmatprep.subr.bf16.mxu0 0
    %361 = vmatpush1.bf16.msra.mxu0 0
    %362 = vmatprep.subr.bf16.mxu0 0
    %363 = vmatpush1.bf16.msra.mxu0 0
    %364 = vmatprep.subr.bf16.mxu0 0
    %365 = vmatpush1.bf16.msra.mxu0 0
    %366 = vmatprep.subr.bf16.mxu0 0
    %367 = vmatpush1.bf16.msra.mxu0 0
    %368 = vmatprep.subr.bf16.mxu0 0
    %369 = vmatpush1.bf16.msra.mxu0 0
    %370 = vmatprep.subr.bf16.mxu0 0
    %371 = vmatpush1.bf16.msra.mxu0 0
    %372 = vmatprep.mubr.bf16.mxu0 0
    %373 = vmatmul.mubr.bf16.gmra.mrb[0].mxu0 %v338
    %v374 = vpop.f32.mrb[0].mxu0
    %v375 = vadd.f32 %v330, %v374
    %v376 = vpop.f32.mrb[0].mxu0
    %v377 = vpop.f32.mrb[0].mxu0
    %v378 = vpop.f32.mrb[0].mxu0
    %379 = vdwg.mxu0
    %v380 = vmax.f32 %v375, 0.0
    %vm381 = vcmask 64512
    %v382 = vsel %vm381, %v380, 0.0
    %v383 = vrot.slane %v382, 4
    %v384 = vadd.f32 %v382, %v383
    %v385 = vrot.slane %v384, 2
    %v386 = vadd.f32 %v384, %v385
    %v387 = vrot.slane %v386, 1
    %v388 = vadd.f32 %v386, %v387
    %v389 = vmul.f32 %v380, %v380
    %v390 = vsel %vm381, %v389, 0.0
    %v391 = vrot.slane %v390, 4
    %v392 = vadd.f32 %v390, %v391
    %v393 = vrot.slane %v392, 2
    %v394 = vadd.f32 %v392, %v393
    %v395 = vrot.slane %v394, 1
    %v396 = vadd.f32 %v394, %v395
    %v397 = vmul.f32 %v388, 0.125
    %v398 = vmul.f32 %v396, 0.125
    %v399 = vmul.f32 %v397, %v397
    %v400 = vsub.f32 %v398, %v399
    %v401 = vadd.f32 %v400, 1e-05
    %v402 = vrsqrt.pop %v401
    %v403 = vmul.f32 %v326, %v402
    %v404 = vmul.f32 %v397, %v403
    %v406 = vrot.slane %v404, 7
    %v408 = vsub.f32 %v326, %v406
    %v409 = vlaneseq
    %v410 = vshrl.u32 %v409, 7
    %v411 = vsub.s32 1, %v410
    %v412 = vrot.slane %v403, %v411
    %v413 = vmul.f32 %v380, %v412
    %v414 = vlaneseq
    %v415 = vshrl.u32 %v414, 7
    %v416 = vsub.s32 2, %v415
    %v417 = vrot.slane %v408, %v416
    %v418 = vadd.f32 %v413, %v417
    %v419 = vld [vmem:[%s11] sm:$0x1]
    %v421 = vlaneseq
    %v422 = vshrl.u32 %v421, 7
    %v423 = vsub.s32 0, %v422
    %v424 = vrot.slane %v419, %v423
    %v426 = vmul.f32 %v418, %v424
    %v427 = vsel %vm381, %v426, 0.0
    %428 = vadd.xlane.f32.xlu0 %v427
    %v429 = vpop.xlane.xlu0 %428
    %s430 = sld [smem:[#allocation2]]
    %v431 = vstv %s430
    %v432 = vadd.f32 %v429, %v431
    %v434 = vlaneseq
    %v435 = vand.u32 %v434, 127
    %v436 = vlaneseq
    %v437 = vshrl.u32 %v436, 7
    %v438 = vsub.s32 %v435, %v437
    %v439 = vrot.slane %v432, %v438
    %vm441 = vcmask 57344
    %442 = vst.msk [vmem:[#allocation3] sm:$0x1] %vm441, %v439
    // Predicated region
    $region54: #{tpu_custom_call.1} parent=1 // pred_check
      _
    $region55: #{tpu_custom_call.1} parent=1 // pred_check_branch
      %444 = sbr.rel (0) target = $region57
    $region56: #{tpu_custom_call.1} parent=1 // pred_region
      %s446 = ssub.s32 16, 16
      %447 = vsyncadd [#allocation4], %s446
      %s449 = sshll.u32 [#allocation3], 4
      %s450 = int_to_ptr.vmem [resolvable:$true] %s449
      %452 = dma.vmem_to_hbm [thread:$0]  %s450, 16, %s13, [#allocation4]
    $region57: #{tpu_custom_call.1} parent=1 // pred_fallthru
      _
    // Predicated region
    $region58: #{tpu_custom_call.1} parent=1 // pred_check
      _
    $region59: #{tpu_custom_call.1} parent=1 // pred_check_branch
      %454 = sbr.rel (0) target = $region61
    $region60: #{tpu_custom_call.1} parent=1 // pred_region
      %455 = dma.done [#allocation4], 16
    $region61: #{tpu_custom_call.1} parent=1 // pred_fallthru
      _
    %456 = vsyncpa [#allocation4], 1

</llo_original>
